<compile_context>
chip_gen: v6e
topology: v6e:2x2x1
jax: 0.10.0
libtpu: 0.0.40
codegen_flags: <defaults>
</compile_context>

<pallas_src>
import numpy as np
import jax
import jax.numpy as jnp
from jax.experimental import pallas as pl
from jax.experimental.pallas import tpu as pltpu

# --- model hyperparameters (from the PyTorch script) ---
N_EMBD = 16
N_HEAD = 4
HEAD_SIZE = N_EMBD // N_HEAD      # 4
BLOCK_SIZE = 7                    # causal context length
T_PAD = 8                         # sequence padded to a sublane multiple
EPS = 1e-5                        # nn.LayerNorm default

# --- packed parameter-slab row layout (lane width = N_HEAD*N_EMBD = 64) ---
HC = N_HEAD * N_EMBD              # 64
ROW_W1 = 0                        # (C, 4C)  = (16, 64)
ROW_B1 = 16                       # (1, 4C)
ROW_W2 = 24                       # (4C, C)  = (64, 16), lanes [:C]
ROW_B2 = 88                       # (1, C)
ROW_LN1G = 96
ROW_LN1B = 97
ROW_LN2G = 98
ROW_LN2B = 99
ROW_BPROJ = 100
ROW_MASK = 104                    # (N_HEAD*N, N) additive mask bias, lanes [:N]


def block_kernel(x_ref, aw_ref, p_ref, out_ref):
    # x_ref: (N, C) with N = B * T_PAD (batch folded, each batch padded to 8 rows)
    x = x_ref[...]
    N, C = x.shape

    ln1_g = p_ref[ROW_LN1G:ROW_LN1G + 1, :C]
    ln1_b = p_ref[ROW_LN1B:ROW_LN1B + 1, :C]
    ln2_g = p_ref[ROW_LN2G:ROW_LN2G + 1, :C]
    ln2_b = p_ref[ROW_LN2B:ROW_LN2B + 1, :C]
    bproj = p_ref[ROW_BPROJ:ROW_BPROJ + 1, :C]
    # static block-diagonal + causal bias (0 where allowed, -1e30 otherwise)
    mask_bias = p_ref[ROW_MASK:ROW_MASK + N_HEAD * N, :N]          # (H*N, N)

    def layernorm(v, g, b):
        mu = jnp.mean(v, axis=-1, keepdims=True)
        var = jnp.mean((v - mu) ** 2, axis=-1, keepdims=True)
        return (v - mu) * jax.lax.rsqrt(var + EPS) * g + b

    # ---- multi-head self-attention on ln1(x), all heads batched ----
    xl = layernorm(x, ln1_g, ln1_b)                                 # (N, C)

    mcat = aw_ref[0:C, :]                                           # (C, H*C): [scale*Wq_h@Wk_h^T]_h
    vpcat = aw_ref[C:2 * C, :]                                      # (C, H*C): [Wv_h@Wproj_h]_h

    # one wide MXU matmul for all heads, then restack heads onto sublanes
    t_all = jnp.dot(xl, mcat, preferred_element_type=jnp.float32)   # (N, H*C)
    t_stk = jnp.concatenate(
        [t_all[:, h * C:(h + 1) * C] for h in range(N_HEAD)], axis=0)   # (H*N, C)

    # ONE scores matmul, ONE mask add, ONE softmax for all heads / batches
    s = jax.lax.dot_general(t_stk, xl, (((1,), (1,)), ((), ())),
                            preferred_element_type=jnp.float32)     # (H*N, N)
    s = s + mask_bias
    s = s - jnp.max(s, axis=-1, keepdims=True)
    e = jnp.exp(s)
    wei = e / jnp.sum(e, axis=-1, keepdims=True)                    # exact softmax

    # value/proj path: one wide matmul, per-head (16,16) MXU accumulation
    vproj_all = jnp.dot(xl, vpcat, preferred_element_type=jnp.float32)   # (N, H*C)
    sa = jnp.zeros((N, C), jnp.float32)
    for h in range(N_HEAD):                                         # static unroll
        sa = sa + jnp.dot(wei[h * N:(h + 1) * N, :],
                          vproj_all[:, h * C:(h + 1) * C],
                          preferred_element_type=jnp.float32)

    x1 = x + sa + bproj                                             # residual 1 (+proj bias once)

    # ---- feed-forward on ln2(x1) ----
    xl2 = layernorm(x1, ln2_g, ln2_b)
    w1 = p_ref[ROW_W1:ROW_W1 + C, :]                                # (C, 4C)
    b1 = p_ref[ROW_B1:ROW_B1 + 1, :]                                # (1, 4C)
    hid = jnp.maximum(
        jnp.dot(xl2, w1, preferred_element_type=jnp.float32) + b1, 0.0)
    w2 = p_ref[ROW_W2:ROW_W2 + 4 * C, :C]                           # (4C, C)
    b2 = p_ref[ROW_B2:ROW_B2 + 1, :C]                               # (1, C)
    ff = jnp.dot(hid, w2, preferred_element_type=jnp.float32) + b2

    # single merged output slab: rows [0,N) = y, rows [N, N+H*N) = attn weights
    out_ref[0:N, :C] = (x1 + ff).astype(out_ref.dtype)              # residual 2
    out_ref[N:N + N_HEAD * N, :N] = wei.astype(out_ref.dtype)


def pack_params(params, batch_size):
    """One-time fold/packing of the Block parameters into two kernel slabs.

    Hoisted out of the forward path (perf feedback): runs once at init.
    """
    (ln1_g, ln1_b, wq, wk, wv, wproj, bproj,
     ln2_g, ln2_b, w1, b1, w2, b2) = params
    C, H, hs = N_EMBD, N_HEAD, HEAD_SIZE
    scale = hs ** -0.5
    N = batch_size * T_PAD
    assert N <= HC, "packed mask slab supports batch_size * T_PAD <= 64"

    wq, wk, wv, wproj = (np.asarray(a, np.float32) for a in (wq, wk, wv, wproj))
    m_cols, vp_cols = [], []
    for h in range(H):
        sl = slice(h * hs, (h + 1) * hs)
        m_cols.append(scale * (wq[:, sl] @ wk[:, sl].T))            # (C, C)
        vp_cols.append(wv[:, sl] @ wproj[sl, :])                    # (C, C)
    attn_slab = np.concatenate(
        [np.concatenate(m_cols, axis=1), np.concatenate(vp_cols, axis=1)],
        axis=0).astype(np.float32)                                  # (2C, H*C)

    p = np.zeros((ROW_MASK + H * N, HC), np.float32)
    p[ROW_W1:ROW_W1 + C, :] = np.asarray(w1)
    p[ROW_B1, :] = np.asarray(b1)[0]
    p[ROW_W2:ROW_W2 + 4 * C, :C] = np.asarray(w2)
    p[ROW_B2, :C] = np.asarray(b2)[0]
    p[ROW_LN1G, :C] = np.asarray(ln1_g)[0]
    p[ROW_LN1B, :C] = np.asarray(ln1_b)[0]
    p[ROW_LN2G, :C] = np.asarray(ln2_g)[0]
    p[ROW_LN2B, :C] = np.asarray(ln2_b)[0]
    p[ROW_BPROJ, :C] = np.asarray(bproj)[0]

    # static additive mask: 0 where same-batch AND causal, else -1e30
    r = np.arange(H * N)[:, None] % N        # folded query index  b*T_PAD + t
    c = np.arange(N)[None, :]                # folded key index    b'*T_PAD + s
    ok = (r // T_PAD == c // T_PAD) & (r % T_PAD >= c % T_PAD)
    p[ROW_MASK:ROW_MASK + H * N, :N] = np.where(ok, 0.0, -1e30).astype(np.float32)

    return jnp.asarray(attn_slab), jnp.asarray(p)


def _block_forward_impl(x, attn_slab, param_slab):
    """x: (B, T, C) float32, T <= BLOCK_SIZE. Returns (y, attns)."""
    B, T, C = x.shape
    assert C == N_EMBD and T <= BLOCK_SIZE
    N = B * T_PAD
    W = max(C, N)

    # pad T -> T_PAD (sublane aligned) and fold batch into rows
    xp = jnp.pad(x, ((0, 0), (0, T_PAD - T), (0, 0)))
    xf = xp.reshape(N, C)

    out = pl.pallas_call(
        block_kernel,
        out_shape=jax.ShapeDtypeStruct((N + N_HEAD * N, W), jnp.float32),
        grid=(1,),
        in_specs=[
            pl.BlockSpec((N, C), lambda i: (0, 0)),                 # x (padded, batch-folded)
            pl.BlockSpec(attn_slab.shape, lambda i: (0, 0)),        # [Mcat ; VPcat]
            pl.BlockSpec(param_slab.shape, lambda i: (0, 0)),       # merged params + mask
        ],
        out_specs=pl.BlockSpec((N + N_HEAD * N, W), lambda i: (0, 0)),
        compiler_params=pltpu.CompilerParams(
            dimension_semantics=("arbitrary",)),
    )(xf, attn_slab, param_slab)

    # un-pad y; extract the per-batch diagonal attention blocks with one gather
    y = out[:N, :C].reshape(B, T_PAD, C)[:, :T, :]
    wei = out[N:, :N].reshape(N_HEAD, B, T_PAD, B, T_PAD)
    bidx = jnp.arange(B)
    attns = wei[:, bidx, :, bidx, :]                                # (B, H, T_PAD, T_PAD)
    return y, attns[:, :, :T, :T]


block_forward = jax.jit(_block_forward_impl)


def make_params(key):
    """Deterministic synthetic parameters, pre-transposed for x @ W layout."""
    ks = jax.random.split(key, 8)
    C = N_EMBD
    scale = 0.1
    wq = scale * jax.random.normal(ks[0], (C, C), jnp.float32)
    wk = scale * jax.random.normal(ks[1], (C, C), jnp.float32)
    wv = scale * jax.random.normal(ks[2], (C, C), jnp.float32)
    wproj = scale * jax.random.normal(ks[3], (C, C), jnp.float32)
    bproj = scale * jax.random.normal(ks[4], (1, C), jnp.float32)
    w1 = scale * jax.random.normal(ks[5], (C, 4 * C), jnp.float32)
    b1 = scale * jax.random.normal(ks[6], (1, 4 * C), jnp.float32)
    w2 = scale * jax.random.normal(ks[7], (4 * C, C), jnp.float32)
    b2 = jnp.zeros((1, C), jnp.float32)
    ln1_g = jnp.ones((1, C), jnp.float32)
    ln1_b = jnp.zeros((1, C), jnp.float32)
    ln2_g = jnp.ones((1, C), jnp.float32)
    ln2_b = jnp.zeros((1, C), jnp.float32)
    return (ln1_g, ln1_b, wq, wk, wv, wproj, bproj,
            ln2_g, ln2_b, w1, b1, w2, b2)


def block_reference(x, params):
    """Pure-JAX reference matching the PyTorch forward (eval mode)."""
    (ln1_g, ln1_b, wq, wk, wv, wproj, bproj,
     ln2_g, ln2_b, w1, b1, w2, b2) = params
    B, T, C = x.shape

    def ln(v, g, b):
        mu = jnp.mean(v, -1, keepdims=True)
        var = jnp.mean((v - mu) ** 2, -1, keepdims=True)
        return (v - mu) / jnp.sqrt(var + EPS) * g[0] + b[0]

    xl = ln(x, ln1_g, ln1_b)
    q = xl @ wq
    k = xl @ wk
    v = xl @ wv
    qh = q.reshape(B, T, N_HEAD, HEAD_SIZE).transpose(0, 2, 1, 3)
    kh = k.reshape(B, T, N_HEAD, HEAD_SIZE).transpose(0, 2, 1, 3)
    vh = v.reshape(B, T, N_HEAD, HEAD_SIZE).transpose(0, 2, 1, 3)
    wei = jnp.einsum('bhqd,bhkd->bhqk', qh, kh) * HEAD_SIZE ** -0.5
    mask = jnp.tril(jnp.ones((T, T), bool))
    wei = jnp.where(mask, wei, -jnp.inf)
    attns = jax.nn.softmax(wei, axis=-1)
    out = jnp.einsum('bhqk,bhkd->bhqd', attns, vh)
    out = out.transpose(0, 2, 1, 3).reshape(B, T, C)
    sa = out @ wproj + bproj[0]
    x1 = x + sa
    xl2 = ln(x1, ln2_g, ln2_b)
    ff = jnp.maximum(xl2 @ w1 + b1[0], 0.0) @ w2 + b2[0]
    return x1 + ff, attns


if __name__ == "__main__":
    key = jax.random.PRNGKey(0)
    kx, kp = jax.random.split(key)

    B, T, C = 2, BLOCK_SIZE, N_EMBD            # (2, 7, 16)
    x = jax.random.normal(kx, (B, T, C), jnp.float32)
    params = make_params(kp)

    # one-time packing (hoisted out of the per-call path)
    attn_slab, param_slab = pack_params(params, B)

    y, attns = block_forward(x, attn_slab, param_slab)
    y = jax.block_until_ready(y)
    attns = jax.block_until_ready(attns)

    y_ref, attns_ref = block_reference(x, params)
    assert y.shape == (B, T, C)
    assert attns.shape == (B, N_HEAD, T, T)
    assert jnp.allclose(y, y_ref, atol=2e-3, rtol=2e-3)
    assert jnp.allclose(attns, attns_ref, atol=2e-3, rtol=2e-3)
    # exact softmax: attention rows sum to 1 (up to f32 rounding)
    assert jnp.allclose(attns.sum(-1), jnp.ones((B, N_HEAD, T)), atol=2e-3)

    print("KERNEL_OK")
</pallas_src>

<mosaic_0001>
module attributes {stable_mosaic.version = 11 : i64} {
  func.func @block_kernel(%arg0: i32, %arg1: memref<16x16xf32, #tpu.memory_space<vmem>>, %arg2: memref<32x64xf32, #tpu.memory_space<vmem>>, %arg3: memref<168x64xf32, #tpu.memory_space<vmem>>, %arg4: memref<80x16xf32, #tpu.memory_space<vmem>>) attributes {dimension_semantics = [#tpu.dimension_semantics<arbitrary>], iteration_bounds = array<i64: 1>, scalar_prefetch = 0 : i64, scratch_operands = 0 : i64, tpu.core_type = #tpu.core_type<tc>, window_params = [{pipeline_mode = #tpu.pipeline_mode<synchronous>, transform_indices = @transform_0, window_bounds = array<i64: 16, 16>}, {pipeline_mode = #tpu.pipeline_mode<synchronous>, transform_indices = @transform_1, window_bounds = array<i64: 32, 64>}, {pipeline_mode = #tpu.pipeline_mode<synchronous>, transform_indices = @transform_2, window_bounds = array<i64: 168, 64>}, {pipeline_mode = #tpu.pipeline_mode<synchronous>, transform_indices = @transform_3, window_bounds = array<i64: 80, 16>}]} {
    %c0 = arith.constant 0 : index
    %c0_0 = arith.constant 0 : index
    %0 = vector.load %arg1[%c0, %c0_0] : memref<16x16xf32, #tpu.memory_space<vmem>>, vector<16x16xf32>
    %c96 = arith.constant 96 : index
    %c0_1 = arith.constant 0 : index
    %1 = vector.load %arg3[%c96, %c0_1] : memref<168x64xf32, #tpu.memory_space<vmem>>, vector<1x16xf32>
    %c97 = arith.constant 97 : index
    %c0_2 = arith.constant 0 : index
    %2 = vector.load %arg3[%c97, %c0_2] : memref<168x64xf32, #tpu.memory_space<vmem>>, vector<1x16xf32>
    %c98 = arith.constant 98 : index
    %c0_3 = arith.constant 0 : index
    %3 = vector.load %arg3[%c98, %c0_3] : memref<168x64xf32, #tpu.memory_space<vmem>>, vector<1x16xf32>
    %c99 = arith.constant 99 : index
    %c0_4 = arith.constant 0 : index
    %4 = vector.load %arg3[%c99, %c0_4] : memref<168x64xf32, #tpu.memory_space<vmem>>, vector<1x16xf32>
    %c100 = arith.constant 100 : index
    %c0_5 = arith.constant 0 : index
    %5 = vector.load %arg3[%c100, %c0_5] : memref<168x64xf32, #tpu.memory_space<vmem>>, vector<1x16xf32>
    %c104 = arith.constant 104 : index
    %c0_6 = arith.constant 0 : index
    %6 = vector.load %arg3[%c104, %c0_6] : memref<168x64xf32, #tpu.memory_space<vmem>>, vector<64x16xf32>
    %cst = arith.constant dense<0.000000e+00> : vector<16xf32>
    %7 = vector.multi_reduction <add>, %0, %cst [1] : vector<16x16xf32> to vector<16xf32>
    %8 = vector.shape_cast %7 : vector<16xf32> to vector<16x1xf32>
    %cst_7 = arith.constant 1.600000e+01 : f32
    %9 = vector.broadcast %cst_7 : f32 to vector<16x1xf32>
    %10 = arith.divf %8, %9 : vector<16x1xf32>
    %11 = vector.broadcast %10 : vector<16x1xf32> to vector<16x16xf32>
    %12 = arith.subf %0, %11 : vector<16x16xf32>
    %13 = arith.mulf %12, %12 : vector<16x16xf32>
    %cst_8 = arith.constant dense<0.000000e+00> : vector<16xf32>
    %14 = vector.multi_reduction <add>, %13, %cst_8 [1] : vector<16x16xf32> to vector<16xf32>
    %15 = vector.shape_cast %14 : vector<16xf32> to vector<16x1xf32>
    %cst_9 = arith.constant 1.600000e+01 : f32
    %16 = vector.broadcast %cst_9 : f32 to vector<16x1xf32>
    %17 = arith.divf %15, %16 : vector<16x1xf32>
    %18 = vector.broadcast %10 : vector<16x1xf32> to vector<16x16xf32>
    %19 = arith.subf %0, %18 : vector<16x16xf32>
    %cst_10 = arith.constant 9.99999974E-6 : f32
    %20 = vector.broadcast %cst_10 : f32 to vector<16x1xf32>
    %21 = arith.addf %17, %20 : vector<16x1xf32>
    %22 = math.rsqrt %21 : vector<16x1xf32>
    %23 = vector.broadcast %22 : vector<16x1xf32> to vector<16x16xf32>
    %24 = arith.mulf %19, %23 : vector<16x16xf32>
    %25 = vector.broadcast %1 : vector<1x16xf32> to vector<16x16xf32>
    %26 = arith.mulf %24, %25 : vector<16x16xf32>
    %27 = vector.broadcast %2 : vector<1x16xf32> to vector<16x16xf32>
    %28 = arith.addf %26, %27 : vector<16x16xf32>
    %c0_11 = arith.constant 0 : index
    %c0_12 = arith.constant 0 : index
    %29 = vector.load %arg2[%c0_11, %c0_12] : memref<32x64xf32, #tpu.memory_space<vmem>>, vector<16x64xf32>
    %c16 = arith.constant 16 : index
    %c0_13 = arith.constant 0 : index
    %30 = vector.load %arg2[%c16, %c0_13] : memref<32x64xf32, #tpu.memory_space<vmem>>, vector<16x64xf32>
    %cst_14 = arith.constant dense<0.000000e+00> : vector<16x64xf32>
    %31 = tpu.matmul %28, %29, %cst_14 {dimension_numbers = #tpu.dot_dimension_numbers<[1], [0], [0], [1], [0, 0, 1, 1], [], []>} : vector<16x16xf32>, vector<16x64xf32>, vector<16x64xf32> -> vector<16x64xf32>
    %32 = vector.extract_strided_slice %31 {offsets = [0, 0], sizes = [16, 16], strides = [1, 1]} : vector<16x64xf32> to vector<16x16xf32>
    %33 = vector.extract_strided_slice %31 {offsets = [0, 16], sizes = [16, 16], strides = [1, 1]} : vector<16x64xf32> to vector<16x16xf32>
    %34 = vector.extract_strided_slice %31 {offsets = [0, 32], sizes = [16, 16], strides = [1, 1]} : vector<16x64xf32> to vector<16x16xf32>
    %35 = vector.extract_strided_slice %31 {offsets = [0, 48], sizes = [16, 16], strides = [1, 1]} : vector<16x64xf32> to vector<16x16xf32>
    %36 = tpu.concatenate %32, %33, %34, %35 in 0 : vector<16x16xf32>, vector<16x16xf32>, vector<16x16xf32>, vector<16x16xf32> -> vector<64x16xf32>
    %cst_15 = arith.constant dense<0.000000e+00> : vector<64x16xf32>
    %37 = tpu.matmul %36, %28, %cst_15 {dimension_numbers = #tpu.dot_dimension_numbers<[1], [1], [0], [0], [0, 0, 1, 0], [], []>} : vector<64x16xf32>, vector<16x16xf32>, vector<64x16xf32> -> vector<64x16xf32>
    %38 = arith.addf %37, %6 : vector<64x16xf32>
    %cst_16 = arith.constant dense<0xFF800000> : vector<64xf32>
    %39 = vector.multi_reduction <maximumf>, %38, %cst_16 [1] : vector<64x16xf32> to vector<64xf32>
    %40 = vector.shape_cast %39 : vector<64xf32> to vector<64x1xf32>
    %41 = vector.broadcast %40 : vector<64x1xf32> to vector<64x16xf32>
    %42 = arith.subf %38, %41 : vector<64x16xf32>
    %43 = math.exp %42 : vector<64x16xf32>
    %cst_17 = arith.constant dense<0.000000e+00> : vector<64xf32>
    %44 = vector.multi_reduction <add>, %43, %cst_17 [1] : vector<64x16xf32> to vector<64xf32>
    %45 = vector.shape_cast %44 : vector<64xf32> to vector<64x1xf32>
    %46 = vector.broadcast %45 : vector<64x1xf32> to vector<64x16xf32>
    %47 = arith.divf %43, %46 : vector<64x16xf32>
    %cst_18 = arith.constant dense<0.000000e+00> : vector<16x64xf32>
    %48 = tpu.matmul %28, %30, %cst_18 {dimension_numbers = #tpu.dot_dimension_numbers<[1], [0], [0], [1], [0, 0, 1, 1], [], []>} : vector<16x16xf32>, vector<16x64xf32>, vector<16x64xf32> -> vector<16x64xf32>
    %cst_19 = arith.constant 0.000000e+00 : f32
    %49 = vector.broadcast %cst_19 : f32 to vector<16x16xf32>
    %50 = vector.extract_strided_slice %47 {offsets = [0, 0], sizes = [16, 16], strides = [1, 1]} : vector<64x16xf32> to vector<16x16xf32>
    %51 = vector.extract_strided_slice %48 {offsets = [0, 0], sizes = [16, 16], strides = [1, 1]} : vector<16x64xf32> to vector<16x16xf32>
    %cst_20 = arith.constant dense<0.000000e+00> : vector<16x16xf32>
    %52 = tpu.matmul %50, %51, %cst_20 {dimension_numbers = #tpu.dot_dimension_numbers<[1], [0], [0], [1], [0, 0, 1, 1], [], []>} : vector<16x16xf32>, vector<16x16xf32>, vector<16x16xf32> -> vector<16x16xf32>
    %53 = arith.addf %49, %52 : vector<16x16xf32>
    %54 = vector.extract_strided_slice %47 {offsets = [16, 0], sizes = [16, 16], strides = [1, 1]} : vector<64x16xf32> to vector<16x16xf32>
    %55 = vector.extract_strided_slice %48 {offsets = [0, 16], sizes = [16, 16], strides = [1, 1]} : vector<16x64xf32> to vector<16x16xf32>
    %cst_21 = arith.constant dense<0.000000e+00> : vector<16x16xf32>
    %56 = tpu.matmul %54, %55, %cst_21 {dimension_numbers = #tpu.dot_dimension_numbers<[1], [0], [0], [1], [0, 0, 1, 1], [], []>} : vector<16x16xf32>, vector<16x16xf32>, vector<16x16xf32> -> vector<16x16xf32>
    %57 = arith.addf %53, %56 : vector<16x16xf32>
    %58 = vector.extract_strided_slice %47 {offsets = [32, 0], sizes = [16, 16], strides = [1, 1]} : vector<64x16xf32> to vector<16x16xf32>
    %59 = vector.extract_strided_slice %48 {offsets = [0, 32], sizes = [16, 16], strides = [1, 1]} : vector<16x64xf32> to vector<16x16xf32>
    %cst_22 = arith.constant dense<0.000000e+00> : vector<16x16xf32>
    %60 = tpu.matmul %58, %59, %cst_22 {dimension_numbers = #tpu.dot_dimension_numbers<[1], [0], [0], [1], [0, 0, 1, 1], [], []>} : vector<16x16xf32>, vector<16x16xf32>, vector<16x16xf32> -> vector<16x16xf32>
    %61 = arith.addf %57, %60 : vector<16x16xf32>
    %62 = vector.extract_strided_slice %47 {offsets = [48, 0], sizes = [16, 16], strides = [1, 1]} : vector<64x16xf32> to vector<16x16xf32>
    %63 = vector.extract_strided_slice %48 {offsets = [0, 48], sizes = [16, 16], strides = [1, 1]} : vector<16x64xf32> to vector<16x16xf32>
    %cst_23 = arith.constant dense<0.000000e+00> : vector<16x16xf32>
    %64 = tpu.matmul %62, %63, %cst_23 {dimension_numbers = #tpu.dot_dimension_numbers<[1], [0], [0], [1], [0, 0, 1, 1], [], []>} : vector<16x16xf32>, vector<16x16xf32>, vector<16x16xf32> -> vector<16x16xf32>
    %65 = arith.addf %61, %64 : vector<16x16xf32>
    %66 = arith.addf %0, %65 : vector<16x16xf32>
    %67 = vector.broadcast %5 : vector<1x16xf32> to vector<16x16xf32>
    %68 = arith.addf %66, %67 : vector<16x16xf32>
    %cst_24 = arith.constant dense<0.000000e+00> : vector<16xf32>
    %69 = vector.multi_reduction <add>, %68, %cst_24 [1] : vector<16x16xf32> to vector<16xf32>
    %70 = vector.shape_cast %69 : vector<16xf32> to vector<16x1xf32>
    %cst_25 = arith.constant 1.600000e+01 : f32
    %71 = vector.broadcast %cst_25 : f32 to vector<16x1xf32>
    %72 = arith.divf %70, %71 : vector<16x1xf32>
    %73 = vector.broadcast %72 : vector<16x1xf32> to vector<16x16xf32>
    %74 = arith.subf %68, %73 : vector<16x16xf32>
    %75 = arith.mulf %74, %74 : vector<16x16xf32>
    %cst_26 = arith.constant dense<0.000000e+00> : vector<16xf32>
    %76 = vector.multi_reduction <add>, %75, %cst_26 [1] : vector<16x16xf32> to vector<16xf32>
    %77 = vector.shape_cast %76 : vector<16xf32> to vector<16x1xf32>
    %cst_27 = arith.constant 1.600000e+01 : f32
    %78 = vector.broadcast %cst_27 : f32 to vector<16x1xf32>
    %79 = arith.divf %77, %78 : vector<16x1xf32>
    %80 = vector.broadcast %72 : vector<16x1xf32> to vector<16x16xf32>
    %81 = arith.subf %68, %80 : vector<16x16xf32>
    %cst_28 = arith.constant 9.99999974E-6 : f32
    %82 = vector.broadcast %cst_28 : f32 to vector<16x1xf32>
    %83 = arith.addf %79, %82 : vector<16x1xf32>
    %84 = math.rsqrt %83 : vector<16x1xf32>
    %85 = vector.broadcast %84 : vector<16x1xf32> to vector<16x16xf32>
    %86 = arith.mulf %81, %85 : vector<16x16xf32>
    %87 = vector.broadcast %3 : vector<1x16xf32> to vector<16x16xf32>
    %88 = arith.mulf %86, %87 : vector<16x16xf32>
    %89 = vector.broadcast %4 : vector<1x16xf32> to vector<16x16xf32>
    %90 = arith.addf %88, %89 : vector<16x16xf32>
    %c0_29 = arith.constant 0 : index
    %c0_30 = arith.constant 0 : index
    %91 = vector.load %arg3[%c0_29, %c0_30] : memref<168x64xf32, #tpu.memory_space<vmem>>, vector<16x64xf32>
    %c16_31 = arith.constant 16 : index
    %c0_32 = arith.constant 0 : index
    %92 = vector.load %arg3[%c16_31, %c0_32] : memref<168x64xf32, #tpu.memory_space<vmem>>, vector<1x64xf32>
    %cst_33 = arith.constant dense<0.000000e+00> : vector<16x64xf32>
    %93 = tpu.matmul %90, %91, %cst_33 {dimension_numbers = #tpu.dot_dimension_numbers<[1], [0], [0], [1], [0, 0, 1, 1], [], []>} : vector<16x16xf32>, vector<16x64xf32>, vector<16x64xf32> -> vector<16x64xf32>
    %94 = vector.broadcast %92 : vector<1x64xf32> to vector<16x64xf32>
    %95 = arith.addf %93, %94 : vector<16x64xf32>
    %cst_34 = arith.constant 0.000000e+00 : f32
    %96 = vector.broadcast %cst_34 : f32 to vector<16x64xf32>
    %97 = arith.maximumf %95, %96 : vector<16x64xf32>
    %c24 = arith.constant 24 : index
    %c0_35 = arith.constant 0 : index
    %98 = vector.load %arg3[%c24, %c0_35] : memref<168x64xf32, #tpu.memory_space<vmem>>, vector<64x16xf32>
    %c88 = arith.constant 88 : index
    %c0_36 = arith.constant 0 : index
    %99 = vector.load %arg3[%c88, %c0_36] : memref<168x64xf32, #tpu.memory_space<vmem>>, vector<1x16xf32>
    %cst_37 = arith.constant dense<0.000000e+00> : vector<16x16xf32>
    %100 = tpu.matmul %97, %98, %cst_37 {dimension_numbers = #tpu.dot_dimension_numbers<[1], [0], [0], [1], [0, 0, 1, 1], [], []>} : vector<16x64xf32>, vector<64x16xf32>, vector<16x16xf32> -> vector<16x16xf32>
    %101 = vector.broadcast %99 : vector<1x16xf32> to vector<16x16xf32>
    %102 = arith.addf %100, %101 : vector<16x16xf32>
    %103 = arith.addf %68, %102 : vector<16x16xf32>
    %c0_38 = arith.constant 0 : index
    %c0_39 = arith.constant 0 : index
    %104 = vector.load %arg4[%c0_38, %c0_39] : memref<80x16xf32, #tpu.memory_space<vmem>>, vector<16x16xf32>
    tpu.vector_store %arg4[%c0_38, %c0_39], %103 {strides = array<i32>} : memref<80x16xf32, #tpu.memory_space<vmem>>, vector<16x16xf32>,
    %c16_40 = arith.constant 16 : index
    %c0_41 = arith.constant 0 : index
    %105 = vector.load %arg4[%c16_40, %c0_41] : memref<80x16xf32, #tpu.memory_space<vmem>>, vector<64x16xf32>
    tpu.vector_store %arg4[%c16_40, %c0_41], %47 {strides = array<i32>} : memref<80x16xf32, #tpu.memory_space<vmem>>, vector<64x16xf32>,
    return
  }
  func.func @transform_0(%arg0: i32) -> (i32, i32) {
    %c0_i32 = arith.constant 0 : i32
    %c0_i32_0 = arith.constant 0 : i32
    %c0_i32_1 = arith.constant 0 : i32
    return %c0_i32, %c0_i32_0 : i32, i32
  }
  func.func @transform_1(%arg0: i32) -> (i32, i32) {
    %c0_i32 = arith.constant 0 : i32
    %c0_i32_0 = arith.constant 0 : i32
    %c0_i32_1 = arith.constant 0 : i32
    return %c0_i32, %c0_i32_0 : i32, i32
  }
  func.func @transform_2(%arg0: i32) -> (i32, i32) {
    %c0_i32 = arith.constant 0 : i32
    %c0_i32_0 = arith.constant 0 : i32
    %c0_i32_1 = arith.constant 0 : i32
    return %c0_i32, %c0_i32_0 : i32, i32
  }
  func.func @transform_3(%arg0: i32) -> (i32, i32) {
    %c0_i32 = arith.constant 0 : i32
    %c0_i32_0 = arith.constant 0 : i32
    %c0_i32_1 = arith.constant 0 : i32
    return %c0_i32, %c0_i32_0 : i32, i32
  }
}

</mosaic_0001>

<llo_original>
// kernel: _block_forward_impl.1
$region0: #{_block_forward_impl.1}
  #allocation0 [shape = 'u32[]', space=smem, size = 0x4, offset = 0x4, fixed_abs, tag = 'smem constant byte address 0x4 - core index']
  #allocation1 [shape = 'u32[144,128]{1,0:T(1,128)}', space=vmem, size = 0x12000, scoped, tag = 'internal scratch']
  %s0 = inlined_call_operand.vmem [shape: f32[16,16], index: 0, kind: input, shape index: {}]
  %s1 = inlined_call_operand.vmem [shape: f32[32,64], index: 1, kind: input, shape index: {}]
  %s2 = inlined_call_operand.vmem [shape: f32[168,64], index: 2, kind: input, shape index: {}]
  %s3 = inlined_call_operand.vmem [shape: f32[80,16], index: 3, kind: output, shape index: {}]
  %s4 = sld [smem:[#allocation0]]
  $region22: #{_block_forward_impl.1} parent=0
    _
  %s6 = ssub.s32 1, %s4
  %s7 = scalar_select 0, %s6, %s4
  // Predicated region
  $region2: #{_block_forward_impl.1} parent=0 // pred_check
    _
  $region3: #{_block_forward_impl.1} parent=0 // pred_check_branch
    %9 = sbr.rel (0) target = $region5
  $region4: #{_block_forward_impl.1} parent=0 // pred_region
    _
  $region5: #{_block_forward_impl.1} parent=0 // pred_fallthru
    _
  // Predicated region
  $region6: #{_block_forward_impl.1} parent=0 // pred_check
    _
  $region7: #{_block_forward_impl.1} parent=0 // pred_check_branch
    %11 = sbr.rel (0) target = $region9
  $region8: #{_block_forward_impl.1} parent=0 // pred_region
    _
  $region9: #{_block_forward_impl.1} parent=0 // pred_fallthru
    _
  // Predicated region
  $region10: #{_block_forward_impl.1} parent=0 // pred_check
    _
  $region11: #{_block_forward_impl.1} parent=0 // pred_check_branch
    %13 = sbr.rel (0) target = $region13
  $region12: #{_block_forward_impl.1} parent=0 // pred_region
    _
  $region13: #{_block_forward_impl.1} parent=0 // pred_fallthru
    _
  %v14 = vld [vmem:[%s0] sm:$0xff]
  %v15 = vld [vmem:[%s0 + $0x8] sm:$0xff]
  %v16 = vld [vmem:[%s2 + $0x60] sm:$0x1]
  %v17 = vld [vmem:[%s2 + $0x61] sm:$0x1]
  %v18 = vld [vmem:[%s2 + $0x62] sm:$0x1]
  %v19 = vld [vmem:[%s2 + $0x63] sm:$0x1]
  %v20 = vld [vmem:[%s2 + $0x64] sm:$0x1]
  %v21 = vld [vmem:[%s2 + $0x68] sm:$0xff]
  %v22 = vld [vmem:[%s2 + $0x70] sm:$0xff]
  %v23 = vld [vmem:[%s2 + $0x78] sm:$0xff]
  %v24 = vld [vmem:[%s2 + $0x80] sm:$0xff]
  %v25 = vld [vmem:[%s2 + $0x88] sm:$0xff]
  %v26 = vld [vmem:[%s2 + $0x90] sm:$0xff]
  %v27 = vld [vmem:[%s2 + $0x98] sm:$0xff]
  %v28 = vld [vmem:[%s2 + $0xa0] sm:$0xff]
  %vm29 = vcmask 130048
  %v30 = vsel %vm29, %v14, 0.0
  %31 = vadd.xlane.f32.xlu0 %v30
  %v32 = vpop.xlane.xlu0 %31
  %v33 = vsel %vm29, %v15, 0.0
  %34 = vadd.xlane.f32.xlu0 %v33
  %v35 = vpop.xlane.xlu0 %34
  %v36 = vrcp.pop 16.0
  %v37 = vmul.f32 %v32, %v36
  %v38 = vmul.f32 %v35, %v36
  %v39 = vsub.f32 %v14, %v37
  %v40 = vsub.f32 %v15, %v38
  %v41 = vmul.f32 %v39, %v39
  %v42 = vmul.f32 %v40, %v40
  %v43 = vsel %vm29, %v41, 0.0
  %44 = vadd.xlane.f32.xlu0 %v43
  %v45 = vpop.xlane.xlu0 %44
  %v46 = vsel %vm29, %v42, 0.0
  %47 = vadd.xlane.f32.xlu0 %v46
  %v48 = vpop.xlane.xlu0 %47
  %v49 = vmul.f32 %v45, %v36
  %v50 = vmul.f32 %v48, %v36
  %v51 = vadd.f32 %v49, 1e-05
  %v52 = vadd.f32 %v50, 1e-05
  %v53 = vrsqrt.pop %v51
  %v54 = vrsqrt.pop %v52
  %v55 = vmul.f32 %v39, %v53
  %v56 = vmul.f32 %v40, %v54
  %v57 = vlaneseq
  %v58 = vshrl.u32 %v57, 7
  %v59 = vsub.s32 0, %v58
  %v60 = vrot.slane %v16, %v59
  %v61 = vmul.f32 %v55, %v60
  %v62 = vmul.f32 %v56, %v60
  %v63 = vlaneseq
  %v64 = vshrl.u32 %v63, 7
  %v65 = vsub.s32 0, %v64
  %v66 = vrot.slane %v17, %v65
  %v67 = vadd.f32 %v61, %v66
  %v68 = vadd.f32 %v62, %v66
  %v69 = vld [vmem:[%s1] sm:$0xff]
  %v70 = vld [vmem:[%s1 + $0x8] sm:$0xff]
  %v71 = vld [vmem:[%s1 + $0x10] sm:$0xff]
  %v72 = vld [vmem:[%s1 + $0x18] sm:$0xff]
  %v74 = vsel %vm29, %v67, 0
  %v77 = vsel %vm29, %v68, 0
  %79 = vmatprep.subr.mxu0 0.0
  %80 = vmatpush1.msra.mxu0 0.0
  %81 = vmatprep.subr.mxu0 0.0
  %82 = vmatpush1.msra.mxu0 0.0
  %83 = vmatprep.subr.mxu0 0.0
  %84 = vmatpush1.msra.mxu0 0.0
  %85 = vmatprep.subr.mxu0 0.0
  %86 = vmatpush1.msra.mxu0 0.0
  %87 = vmatprep.subr.mxu0 0.0
  %88 = vmatpush1.msra.mxu0 0.0
  %89 = vmatprep.subr.mxu0 0.0
  %90 = vmatpush1.msra.mxu0 0.0
  %91 = vmatprep.subr.mxu0 0.0
  %92 = vmatpush1.msra.mxu0 0.0
  %93 = vmatprep.subr.mxu0 0.0
  %94 = vmatpush1.msra.mxu0 0.0
  %95 = vmatprep.subr.mxu0 0.0
  %96 = vmatpush1.msra.mxu0 0.0
  %97 = vmatprep.subr.mxu0 0.0
  %98 = vmatpush1.msra.mxu0 0.0
  %99 = vmatprep.subr.mxu0 0.0
  %100 = vmatpush1.msra.mxu0 0.0
  %101 = vmatprep.subr.mxu0 0.0
  %102 = vmatpush1.msra.mxu0 0.0
  %103 = vmatprep.subr.mxu0 0.0
  %104 = vmatpush1.msra.mxu0 0.0
  %105 = vmatprep.subr.mxu0 0.0
  %106 = vmatpush1.msra.mxu0 0.0
  %107 = vmatprep.subr.mxu0 0.0
  %108 = vmatpush1.msra.mxu0 %v70
  %109 = vmatprep.subr.mxu0 0.0
  %110 = vmatpush1.msra.mxu0 %v69
  %111 = vmatprep.subr.mxu0 0.0
  %112 = vmatpush2.msra.mxu0 0.0
  %113 = vmatprep.subr.mxu0 0.0
  %114 = vmatpush2.msra.mxu0 0.0
  %115 = vmatprep.subr.mxu0 0.0
  %116 = vmatpush2.msra.mxu0 0.0
  %117 = vmatprep.subr.mxu0 0.0
  %118 = vmatpush2.msra.mxu0 0.0
  %119 = vmatprep.subr.mxu0 0.0
  %120 = vmatpush2.msra.mxu0 0.0
  %121 = vmatprep.subr.mxu0 0.0
  %122 = vmatpush2.msra.mxu0 0.0
  %123 = vmatprep.subr.mxu0 0.0
  %124 = vmatpush2.msra.mxu0 0.0
  %125 = vmatprep.subr.mxu0 0.0
  %126 = vmatpush2.msra.mxu0 0.0
  %127 = vmatprep.subr.mxu0 0.0
  %128 = vmatpush2.msra.mxu0 0.0
  %129 = vmatprep.subr.mxu0 0.0
  %130 = vmatpush2.msra.mxu0 0.0
  %131 = vmatprep.subr.mxu0 0.0
  %132 = vmatpush2.msra.mxu0 0.0
  %133 = vmatprep.subr.mxu0 0.0
  %134 = vmatpush2.msra.mxu0 0.0
  %135 = vmatprep.subr.mxu0 0.0
  %136 = vmatpush2.msra.mxu0 0.0
  %137 = vmatprep.subr.mxu0 0.0
  %138 = vmatpush2.msra.mxu0 0.0
  %139 = vmatprep.subr.mxu0 0.0
  %140 = vmatpush2.msra.mxu0 0.0
  %141 = vmatprep.subr.mxu0 0.0
  %142 = vmatpush2.msra.mxu0 0.0
  %143 = vmatprep.mubr.f32.mxu0 0.0
  %144 = vmatmul.mubr.f32.gmra.mxu0 %v74
  %v145 = vpop.f32.mrf.mxu0
  %v146 = vadd.f32 0.0, %v145
  %v147 = vpop.f32.mrf.mxu0
  %148 = vmatprep.mubr.f32.mxu0 0.0
  %149 = vmatmul.mubr.f32.gmra.mxu0 %v77
  %v150 = vpop.f32.mrf.mxu0
  %v151 = vadd.f32 0.0, %v150
  %v152 = vpop.f32.mrf.mxu0
  %153 = vdwg.mxu0
  %156 = vrot.lane.b32.xlu0 %v146, 112
  %v157 = vpop.permute.xlu0 %156
  %158 = vrot.lane.b32.xlu0 %v151, 112
  %v159 = vpop.permute.xlu0 %158
  %160 = vrot.lane.b32.xlu0 %v146, 96
  %v161 = vpop.permute.xlu0 %160
  %162 = vrot.lane.b32.xlu0 %v151, 96
  %v163 = vpop.permute.xlu0 %162
  %164 = vrot.lane.b32.xlu0 %v146, 80
  %v165 = vpop.permute.xlu0 %164
  %166 = vrot.lane.b32.xlu0 %v151, 80
  %v167 = vpop.permute.xlu0 %166
  %v168 = vsel %vm29, %v146, 0
  %v170 = vsel %vm29, %v151, 0
  %v172 = vsel %vm29, %v157, 0
  %v174 = vsel %vm29, %v159, 0
  %v176 = vsel %vm29, %v161, 0
  %v178 = vsel %vm29, %v163, 0
  %v180 = vsel %vm29, %v165, 0
  %v182 = vsel %vm29, %v167, 0
  %184 = vmatprep.subr.mxu0 0.0
  %185 = vmatpush1.xpose.msra.mxu0 0.0
  %186 = vmatprep.subr.mxu0 0.0
  %187 = vmatpush1.xpose.msra.mxu0 0.0
  %188 = vmatprep.subr.mxu0 0.0
  %189 = vmatpush1.xpose.msra.mxu0 0.0
  %190 = vmatprep.subr.mxu0 0.0
  %191 = vmatpush1.xpose.msra.mxu0 0.0
  %192 = vmatprep.subr.mxu0 0.0
  %193 = vmatpush1.xpose.msra.mxu0 0.0
  %194 = vmatprep.subr.mxu0 0.0
  %195 = vmatpush1.xpose.msra.mxu0 0.0
  %196 = vmatprep.subr.mxu0 0.0
  %197 = vmatpush1.xpose.msra.mxu0 0.0
  %198 = vmatprep.subr.mxu0 0.0
  %199 = vmatpush1.xpose.msra.mxu0 0.0
  %200 = vmatprep.subr.mxu0 0.0
  %201 = vmatpush1.xpose.msra.mxu0 0.0
  %202 = vmatprep.subr.mxu0 0.0
  %203 = vmatpush1.xpose.msra.mxu0 0.0
  %204 = vmatprep.subr.mxu0 0.0
  %205 = vmatpush1.xpose.msra.mxu0 0.0
  %206 = vmatprep.subr.mxu0 0.0
  %207 = vmatpush1.xpose.msra.mxu0 0.0
  %208 = vmatprep.subr.mxu0 0.0
  %209 = vmatpush1.xpose.msra.mxu0 0.0
  %210 = vmatprep.subr.mxu0 0.0
  %211 = vmatpush1.xpose.msra.mxu0 0.0
  %212 = vmatprep.subr.mxu0 0.0
  %213 = vmatpush1.xpose.msra.mxu0 %v77
  %214 = vmatprep.subr.mxu0 0.0
  %215 = vmatpush1.xpose.msra.mxu0 %v74
  %216 = vmatprep.subr.mxu0 0.0
  %217 = vmatpush2.xpose.msra.mxu0 0.0
  %218 = vmatprep.subr.mxu0 0.0
  %219 = vmatpush2.xpose.msra.mxu0 0.0
  %220 = vmatprep.subr.mxu0 0.0
  %221 = vmatpush2.xpose.msra.mxu0 0.0
  %222 = vmatprep.subr.mxu0 0.0
  %223 = vmatpush2.xpose.msra.mxu0 0.0
  %224 = vmatprep.subr.mxu0 0.0
  %225 = vmatpush2.xpose.msra.mxu0 0.0
  %226 = vmatprep.subr.mxu0 0.0
  %227 = vmatpush2.xpose.msra.mxu0 0.0
  %228 = vmatprep.subr.mxu0 0.0
  %229 = vmatpush2.xpose.msra.mxu0 0.0
  %230 = vmatprep.subr.mxu0 0.0
  %231 = vmatpush2.xpose.msra.mxu0 0.0
  %232 = vmatprep.subr.mxu0 0.0
  %233 = vmatpush2.xpose.msra.mxu0 0.0
  %234 = vmatprep.subr.mxu0 0.0
  %235 = vmatpush2.xpose.msra.mxu0 0.0
  %236 = vmatprep.subr.mxu0 0.0
  %237 = vmatpush2.xpose.msra.mxu0 0.0
  %238 = vmatprep.subr.mxu0 0.0
  %239 = vmatpush2.xpose.msra.mxu0 0.0
  %240 = vmatprep.subr.mxu0 0.0
  %241 = vmatpush2.xpose.msra.mxu0 0.0
  %242 = vmatprep.subr.mxu0 0.0
  %243 = vmatpush2.xpose.msra.mxu0 0.0
  %244 = vmatprep.subr.mxu0 0.0
  %245 = vmatpush2.xpose.msra.mxu0 0.0
  %246 = vmatprep.subr.mxu0 0.0
  %247 = vmatpush2.xpose.msra.mxu0 0.0
  %248 = vmatprep.mubr.f32.mxu0 0.0
  %249 = vmatmul.mubr.f32.gmra.mxu0 %v168
  %v250 = vpop.f32.mrf.mxu0
  %v251 = vadd.f32 %v21, %v250
  %v252 = vpop.f32.mrf.mxu0
  %253 = vmatprep.mubr.f32.mxu0 0.0
  %254 = vmatmul.mubr.f32.gmra.mxu0 %v170
  %v255 = vpop.f32.mrf.mxu0
  %v256 = vadd.f32 %v22, %v255
  %v257 = vpop.f32.mrf.mxu0
  %258 = vmatprep.mubr.f32.mxu0 0.0
  %259 = vmatmul.mubr.f32.gmra.mxu0 %v172
  %v260 = vpop.f32.mrf.mxu0
  %v261 = vadd.f32 %v23, %v260
  %v262 = vpop.f32.mrf.mxu0
  %263 = vmatprep.mubr.f32.mxu0 0.0
  %264 = vmatmul.mubr.f32.gmra.mxu0 %v174
  %v265 = vpop.f32.mrf.mxu0
  %v266 = vadd.f32 %v24, %v265
  %v267 = vpop.f32.mrf.mxu0
  %268 = vmatprep.mubr.f32.mxu0 0.0
  %269 = vmatmul.mubr.f32.gmra.mxu0 %v176
  %v270 = vpop.f32.mrf.mxu0
  %v271 = vadd.f32 %v25, %v270
  %v272 = vpop.f32.mrf.mxu0
  %273 = vmatprep.mubr.f32.mxu0 0.0
  %274 = vmatmul.mubr.f32.gmra.mxu0 %v178
  %v275 = vpop.f32.mrf.mxu0
  %v276 = vadd.f32 %v26, %v275
  %v277 = vpop.f32.mrf.mxu0
  %278 = vmatprep.mubr.f32.mxu0 0.0
  %279 = vmatmul.mubr.f32.gmra.mxu0 %v180
  %v280 = vpop.f32.mrf.mxu0
  %v281 = vadd.f32 %v27, %v280
  %v282 = vpop.f32.mrf.mxu0
  %283 = vmatprep.mubr.f32.mxu0 0.0
  %284 = vmatmul.mubr.f32.gmra.mxu0 %v182
  %v285 = vpop.f32.mrf.mxu0
  %v286 = vadd.f32 %v28, %v285
  %v287 = vpop.f32.mrf.mxu0
  %288 = vdwg.mxu0
  %v289 = vsel %vm29, %v251, -inf
  %290 = vmax.xlane.f32.xlu0 %v289
  %v291 = vpop.xlane.xlu0 %290
  %v292 = vsel %vm29, %v256, -inf
  %293 = vmax.xlane.f32.xlu0 %v292
  %v294 = vpop.xlane.xlu0 %293
  %v295 = vsel %vm29, %v261, -inf
  %296 = vmax.xlane.f32.xlu0 %v295
  %v297 = vpop.xlane.xlu0 %296
  %v298 = vsel %vm29, %v266, -inf
  %299 = vmax.xlane.f32.xlu0 %v298
  %v300 = vpop.xlane.xlu0 %299
  %v301 = vsel %vm29, %v271, -inf
  %302 = vmax.xlane.f32.xlu0 %v301
  %v303 = vpop.xlane.xlu0 %302
  %v304 = vsel %vm29, %v276, -inf
  %305 = vmax.xlane.f32.xlu0 %v304
  %v306 = vpop.xlane.xlu0 %305
  %v307 = vsel %vm29, %v281, -inf
  %308 = vmax.xlane.f32.xlu0 %v307
  %v309 = vpop.xlane.xlu0 %308
  %v310 = vsel %vm29, %v286, -inf
  %311 = vmax.xlane.f32.xlu0 %v310
  %v312 = vpop.xlane.xlu0 %311
  %v313 = vsub.f32 %v251, %v291
  %v314 = vsub.f32 %v256, %v294
  %v315 = vsub.f32 %v261, %v297
  %v316 = vsub.f32 %v266, %v300
  %v317 = vsub.f32 %v271, %v303
  %v318 = vsub.f32 %v276, %v306
  %v319 = vsub.f32 %v281, %v309
  %v320 = vsub.f32 %v286, %v312
  %v321 = vmul.f32 %v313, 1.442695
  %v322 = vpow.pop %v321
  %v323 = vmul.f32 %v314, 1.442695
  %v324 = vpow.pop %v323
  %v325 = vmul.f32 %v315, 1.442695
  %v326 = vpow.pop %v325
  %v327 = vmul.f32 %v316, 1.442695
  %v328 = vpow.pop %v327
  %v329 = vmul.f32 %v317, 1.442695
  %v330 = vpow.pop %v329
  %v331 = vmul.f32 %v318, 1.442695
  %v332 = vpow.pop %v331
  %v333 = vmul.f32 %v319, 1.442695
  %v334 = vpow.pop %v333
  %v335 = vmul.f32 %v320, 1.442695
  %v336 = vpow.pop %v335
  %v337 = vsel %vm29, %v322, 0.0
  %338 = vadd.xlane.f32.xlu0 %v337
  %v339 = vpop.xlane.xlu0 %338
  %v340 = vsel %vm29, %v324, 0.0
  %341 = vadd.xlane.f32.xlu0 %v340
  %v342 = vpop.xlane.xlu0 %341
  %v343 = vsel %vm29, %v326, 0.0
  %344 = vadd.xlane.f32.xlu0 %v343
  %v345 = vpop.xlane.xlu0 %344
  %v346 = vsel %vm29, %v328, 0.0
  %347 = vadd.xlane.f32.xlu0 %v346
  %v348 = vpop.xlane.xlu0 %347
  %v349 = vsel %vm29, %v330, 0.0
  %350 = vadd.xlane.f32.xlu0 %v349
  %v351 = vpop.xlane.xlu0 %350
  %v352 = vsel %vm29, %v332, 0.0
  %353 = vadd.xlane.f32.xlu0 %v352
  %v354 = vpop.xlane.xlu0 %353
  %v355 = vsel %vm29, %v334, 0.0
  %356 = vadd.xlane.f32.xlu0 %v355
  %v357 = vpop.xlane.xlu0 %356
  %v358 = vsel %vm29, %v336, 0.0
  %359 = vadd.xlane.f32.xlu0 %v358
  %v360 = vpop.xlane.xlu0 %359
  %v361 = vrcp.pop %v339
  %v362 = vmul.f32 %v322, %v361
  %v363 = vrcp.pop %v342
  %v364 = vmul.f32 %v324, %v363
  %v365 = vrcp.pop %v345
  %v366 = vmul.f32 %v326, %v365
  %v367 = vrcp.pop %v348
  %v368 = vmul.f32 %v328, %v367
  %v369 = vrcp.pop %v351
  %v370 = vmul.f32 %v330, %v369
  %v371 = vrcp.pop %v354
  %v372 = vmul.f32 %v332, %v371
  %v373 = vrcp.pop %v357
  %v374 = vmul.f32 %v334, %v373
  %v375 = vrcp.pop %v360
  %v376 = vmul.f32 %v336, %v375
  %377 = vmatprep.subr.mxu0 0.0
  %378 = vmatpush1.msra.mxu0 0.0
  %379 = vmatprep.subr.mxu0 0.0
  %380 = vmatpush1.msra.mxu0 0.0
  %381 = vmatprep.subr.mxu0 0.0
  %382 = vmatpush1.msra.mxu0 0.0
  %383 = vmatprep.subr.mxu0 0.0
  %384 = vmatpush1.msra.mxu0 0.0
  %385 = vmatprep.subr.mxu0 0.0
  %386 = vmatpush1.msra.mxu0 0.0
  %387 = vmatprep.subr.mxu0 0.0
  %388 = vmatpush1.msra.mxu0 0.0
  %389 = vmatprep.subr.mxu0 0.0
  %390 = vmatpush1.msra.mxu0 0.0
  %391 = vmatprep.subr.mxu0 0.0
  %392 = vmatpush1.msra.mxu0 0.0
  %393 = vmatprep.subr.mxu0 0.0
  %394 = vmatpush1.msra.mxu0 0.0
  %395 = vmatprep.subr.mxu0 0.0
  %396 = vmatpush1.msra.mxu0 0.0
  %397 = vmatprep.subr.mxu0 0.0
  %398 = vmatpush1.msra.mxu0 0.0
  %399 = vmatprep.subr.mxu0 0.0
  %400 = vmatpush1.msra.mxu0 0.0
  %401 = vmatprep.subr.mxu0 0.0
  %402 = vmatpush1.msra.mxu0 0.0
  %403 = vmatprep.subr.mxu0 0.0
  %404 = vmatpush1.msra.mxu0 0.0
  %405 = vmatprep.subr.mxu0 0.0
  %406 = vmatpush1.msra.mxu0 %v72
  %407 = vmatprep.subr.mxu0 0.0
  %408 = vmatpush1.msra.mxu0 %v71
  %409 = vmatprep.subr.mxu0 0.0
  %410 = vmatpush2.msra.mxu0 0.0
  %411 = vmatprep.subr.mxu0 0.0
  %412 = vmatpush2.msra.mxu0 0.0
  %413 = vmatprep.subr.mxu0 0.0
  %414 = vmatpush2.msra.mxu0 0.0
  %415 = vmatprep.subr.mxu0 0.0
  %416 = vmatpush2.msra.mxu0 0.0
  %417 = vmatprep.subr.mxu0 0.0
  %418 = vmatpush2.msra.mxu0 0.0
  %419 = vmatprep.subr.mxu0 0.0
  %420 = vmatpush2.msra.mxu0 0.0
  %421 = vmatprep.subr.mxu0 0.0
  %422 = vmatpush2.msra.mxu0 0.0
  %423 = vmatprep.subr.mxu0 0.0
  %424 = vmatpush2.msra.mxu0 0.0
  %425 = vmatprep.subr.mxu0 0.0
  %426 = vmatpush2.msra.mxu0 0.0
  %427 = vmatprep.subr.mxu0 0.0
  %428 = vmatpush2.msra.mxu0 0.0
  %429 = vmatprep.subr.mxu0 0.0
  %430 = vmatpush2.msra.mxu0 0.0
  %431 = vmatprep.subr.mxu0 0.0
  %432 = vmatpush2.msra.mxu0 0.0
  %433 = vmatprep.subr.mxu0 0.0
  %434 = vmatpush2.msra.mxu0 0.0
  %435 = vmatprep.subr.mxu0 0.0
  %436 = vmatpush2.msra.mxu0 0.0
  %437 = vmatprep.subr.mxu0 0.0
  %438 = vmatpush2.msra.mxu0 0.0
  %439 = vmatprep.subr.mxu0 0.0
  %440 = vmatpush2.msra.mxu0 0.0
  %441 = vmatprep.mubr.f32.mxu0 0.0
  %442 = vmatmul.mubr.f32.gmra.mxu0 %v74
  %v443 = vpop.f32.mrf.mxu0
  %v444 = vadd.f32 0.0, %v443
  %v445 = vpop.f32.mrf.mxu0
  %446 = vmatprep.mubr.f32.mxu0 0.0
  %447 = vmatmul.mubr.f32.gmra.mxu0 %v77
  %v448 = vpop.f32.mrf.mxu0
  %v449 = vadd.f32 0.0, %v448
  %v450 = vpop.f32.mrf.mxu0
  %451 = vdwg.mxu0
  %454 = vrot.lane.b32.xlu0 %v444, 112
  %v455 = vpop.permute.xlu0 %454
  %456 = vrot.lane.b32.xlu0 %v449, 112
  %v457 = vpop.permute.xlu0 %456
  %v461 = vsel %vm29, %v366, 0
  %v464 = vsel %vm29, %v368, 0
  %466 = vmatprep.subr.mxu0 0.0
  %467 = vmatpush1.msra.mxu0 0.0
  %468 = vmatprep.subr.mxu0 0.0
  %469 = vmatpush1.msra.mxu0 0.0
  %470 = vmatprep.subr.mxu0 0.0
  %471 = vmatpush1.msra.mxu0 0.0
  %472 = vmatprep.subr.mxu0 0.0
  %473 = vmatpush1.msra.mxu0 0.0
  %474 = vmatprep.subr.mxu0 0.0
  %475 = vmatpush1.msra.mxu0 0.0
  %476 = vmatprep.subr.mxu0 0.0
  %477 = vmatpush1.msra.mxu0 0.0
  %478 = vmatprep.subr.mxu0 0.0
  %479 = vmatpush1.msra.mxu0 0.0
  %480 = vmatprep.subr.mxu0 0.0
  %481 = vmatpush1.msra.mxu0 0.0
  %482 = vmatprep.subr.mxu0 0.0
  %483 = vmatpush1.msra.mxu0 0.0
  %484 = vmatprep.subr.mxu0 0.0
  %485 = vmatpush1.msra.mxu0 0.0
  %486 = vmatprep.subr.mxu0 0.0
  %487 = vmatpush1.msra.mxu0 0.0
  %488 = vmatprep.subr.mxu0 0.0
  %489 = vmatpush1.msra.mxu0 0.0
  %490 = vmatprep.subr.mxu0 0.0
  %491 = vmatpush1.msra.mxu0 0.0
  %492 = vmatprep.subr.mxu0 0.0
  %493 = vmatpush1.msra.mxu0 0.0
  %494 = vmatprep.subr.mxu0 0.0
  %495 = vmatpush1.msra.mxu0 %v457
  %496 = vmatprep.subr.mxu0 0.0
  %497 = vmatpush1.msra.mxu0 %v455
  %498 = vmatprep.subr.mxu0 0.0
  %499 = vmatpush2.msra.mxu0 0.0
  %500 = vmatprep.subr.mxu0 0.0
  %501 = vmatpush2.msra.mxu0 0.0
  %502 = vmatprep.subr.mxu0 0.0
  %503 = vmatpush2.msra.mxu0 0.0
  %504 = vmatprep.subr.mxu0 0.0
  %505 = vmatpush2.msra.mxu0 0.0
  %506 = vmatprep.subr.mxu0 0.0
  %507 = vmatpush2.msra.mxu0 0.0
  %508 = vmatprep.subr.mxu0 0.0
  %509 = vmatpush2.msra.mxu0 0.0
  %510 = vmatprep.subr.mxu0 0.0
  %511 = vmatpush2.msra.mxu0 0.0
  %512 = vmatprep.subr.mxu0 0.0
  %513 = vmatpush2.msra.mxu0 0.0
  %514 = vmatprep.subr.mxu0 0.0
  %515 = vmatpush2.msra.mxu0 0.0
  %516 = vmatprep.subr.mxu0 0.0
  %517 = vmatpush2.msra.mxu0 0.0
  %518 = vmatprep.subr.mxu0 0.0
  %519 = vmatpush2.msra.mxu0 0.0
  %520 = vmatprep.subr.mxu0 0.0
  %521 = vmatpush2.msra.mxu0 0.0
  %522 = vmatprep.subr.mxu0 0.0
  %523 = vmatpush2.msra.mxu0 0.0
  %524 = vmatprep.subr.mxu0 0.0
  %525 = vmatpush2.msra.mxu0 0.0
  %526 = vmatprep.subr.mxu0 0.0
  %527 = vmatpush2.msra.mxu0 0.0
  %528 = vmatprep.subr.mxu0 0.0
  %529 = vmatpush2.msra.mxu0 0.0
  %530 = vmatprep.mubr.f32.mxu0 0.0
  %531 = vmatmul.mubr.f32.gmra.mxu0 %v461
  %v532 = vpop.f32.mrf.mxu0
  %v533 = vadd.f32 0.0, %v532
  %v534 = vpop.f32.mrf.mxu0
  %535 = vmatprep.mubr.f32.mxu0 0.0
  %536 = vmatmul.mubr.f32.gmra.mxu0 %v464
  %v537 = vpop.f32.mrf.mxu0
  %v538 = vadd.f32 0.0, %v537
  %v539 = vpop.f32.mrf.mxu0
  %540 = vdwg.mxu0
  %v542 = vsel %vm29, %v362, 0
  %v545 = vsel %vm29, %v364, 0
  %547 = vmatprep.subr.mxu0 0.0
  %548 = vmatpush1.msra.mxu0 0.0
  %549 = vmatprep.subr.mxu0 0.0
  %550 = vmatpush1.msra.mxu0 0.0
  %551 = vmatprep.subr.mxu0 0.0
  %552 = vmatpush1.msra.mxu0 0.0
  %553 = vmatprep.subr.mxu0 0.0
  %554 = vmatpush1.msra.mxu0 0.0
  %555 = vmatprep.subr.mxu0 0.0
  %556 = vmatpush1.msra.mxu0 0.0
  %557 = vmatprep.subr.mxu0 0.0
  %558 = vmatpush1.msra.mxu0 0.0
  %559 = vmatprep.subr.mxu0 0.0
  %560 = vmatpush1.msra.mxu0 0.0
  %561 = vmatprep.subr.mxu0 0.0
  %562 = vmatpush1.msra.mxu0 0.0
  %563 = vmatprep.subr.mxu0 0.0
  %564 = vmatpush1.msra.mxu0 0.0
  %565 = vmatprep.subr.mxu0 0.0
  %566 = vmatpush1.msra.mxu0 0.0
  %567 = vmatprep.subr.mxu0 0.0
  %568 = vmatpush1.msra.mxu0 0.0
  %569 = vmatprep.subr.mxu0 0.0
  %570 = vmatpush1.msra.mxu0 0.0
  %571 = vmatprep.subr.mxu0 0.0
  %572 = vmatpush1.msra.mxu0 0.0
  %573 = vmatprep.subr.mxu0 0.0
  %574 = vmatpush1.msra.mxu0 0.0
  %575 = vmatprep.subr.mxu0 0.0
  %576 = vmatpush1.msra.mxu0 %v449
  %577 = vmatprep.subr.mxu0 0.0
  %578 = vmatpush1.msra.mxu0 %v444
  %579 = vmatprep.subr.mxu0 0.0
  %580 = vmatpush2.msra.mxu0 0.0
  %581 = vmatprep.subr.mxu0 0.0
  %582 = vmatpush2.msra.mxu0 0.0
  %583 = vmatprep.subr.mxu0 0.0
  %584 = vmatpush2.msra.mxu0 0.0
  %585 = vmatprep.subr.mxu0 0.0
  %586 = vmatpush2.msra.mxu0 0.0
  %587 = vmatprep.subr.mxu0 0.0
  %588 = vmatpush2.msra.mxu0 0.0
  %589 = vmatprep.subr.mxu0 0.0
  %590 = vmatpush2.msra.mxu0 0.0
  %591 = vmatprep.subr.mxu0 0.0
  %592 = vmatpush2.msra.mxu0 0.0
  %593 = vmatprep.subr.mxu0 0.0
  %594 = vmatpush2.msra.mxu0 0.0
  %595 = vmatprep.subr.mxu0 0.0
  %596 = vmatpush2.msra.mxu0 0.0
  %597 = vmatprep.subr.mxu0 0.0
  %598 = vmatpush2.msra.mxu0 0.0
  %599 = vmatprep.subr.mxu0 0.0
  %600 = vmatpush2.msra.mxu0 0.0
  %601 = vmatprep.subr.mxu0 0.0
  %602 = vmatpush2.msra.mxu0 0.0
  %603 = vmatprep.subr.mxu0 0.0
  %604 = vmatpush2.msra.mxu0 0.0
  %605 = vmatprep.subr.mxu0 0.0
  %606 = vmatpush2.msra.mxu0 0.0
  %607 = vmatprep.subr.mxu0 0.0
  %608 = vmatpush2.msra.mxu0 0.0
  %609 = vmatprep.subr.mxu0 0.0
  %610 = vmatpush2.msra.mxu0 0.0
  %611 = vmatprep.mubr.f32.mxu0 0.0
  %612 = vmatmul.mubr.f32.gmra.mxu0 %v542
  %v613 = vpop.f32.mrf.mxu0
  %v614 = vadd.f32 %v533, %v613
  %v615 = vpop.f32.mrf.mxu0
  %616 = vmatprep.mubr.f32.mxu0 0.0
  %617 = vmatmul.mubr.f32.gmra.mxu0 %v545
  %v618 = vpop.f32.mrf.mxu0
  %v619 = vadd.f32 %v538, %v618
  %v620 = vpop.f32.mrf.mxu0
  %621 = vdwg.mxu0
  %622 = vrot.lane.b32.xlu0 %v444, 96
  %v623 = vpop.permute.xlu0 %622
  %624 = vrot.lane.b32.xlu0 %v449, 96
  %v625 = vpop.permute.xlu0 %624
  %v629 = vsel %vm29, %v370, 0
  %v632 = vsel %vm29, %v372, 0
  %634 = vmatprep.subr.mxu0 0.0
  %635 = vmatpush1.msra.mxu0 0.0
  %636 = vmatprep.subr.mxu0 0.0
  %637 = vmatpush1.msra.mxu0 0.0
  %638 = vmatprep.subr.mxu0 0.0
  %639 = vmatpush1.msra.mxu0 0.0
  %640 = vmatprep.subr.mxu0 0.0
  %641 = vmatpush1.msra.mxu0 0.0
  %642 = vmatprep.subr.mxu0 0.0
  %643 = vmatpush1.msra.mxu0 0.0
  %644 = vmatprep.subr.mxu0 0.0
  %645 = vmatpush1.msra.mxu0 0.0
  %646 = vmatprep.subr.mxu0 0.0
  %647 = vmatpush1.msra.mxu0 0.0
  %648 = vmatprep.subr.mxu0 0.0
  %649 = vmatpush1.msra.mxu0 0.0
  %650 = vmatprep.subr.mxu0 0.0
  %651 = vmatpush1.msra.mxu0 0.0
  %652 = vmatprep.subr.mxu0 0.0
  %653 = vmatpush1.msra.mxu0 0.0
  %654 = vmatprep.subr.mxu0 0.0
  %655 = vmatpush1.msra.mxu0 0.0
  %656 = vmatprep.subr.mxu0 0.0
  %657 = vmatpush1.msra.mxu0 0.0
  %658 = vmatprep.subr.mxu0 0.0
  %659 = vmatpush1.msra.mxu0 0.0
  %660 = vmatprep.subr.mxu0 0.0
  %661 = vmatpush1.msra.mxu0 0.0
  %662 = vmatprep.subr.mxu0 0.0
  %663 = vmatpush1.msra.mxu0 %v625
  %664 = vmatprep.subr.mxu0 0.0
  %665 = vmatpush1.msra.mxu0 %v623
  %666 = vmatprep.subr.mxu0 0.0
  %667 = vmatpush2.msra.mxu0 0.0
  %668 = vmatprep.subr.mxu0 0.0
  %669 = vmatpush2.msra.mxu0 0.0
  %670 = vmatprep.subr.mxu0 0.0
  %671 = vmatpush2.msra.mxu0 0.0
  %672 = vmatprep.subr.mxu0 0.0
  %673 = vmatpush2.msra.mxu0 0.0
  %674 = vmatprep.subr.mxu0 0.0
  %675 = vmatpush2.msra.mxu0 0.0
  %676 = vmatprep.subr.mxu0 0.0
  %677 = vmatpush2.msra.mxu0 0.0
  %678 = vmatprep.subr.mxu0 0.0
  %679 = vmatpush2.msra.mxu0 0.0
  %680 = vmatprep.subr.mxu0 0.0
  %681 = vmatpush2.msra.mxu0 0.0
  %682 = vmatprep.subr.mxu0 0.0
  %683 = vmatpush2.msra.mxu0 0.0
  %684 = vmatprep.subr.mxu0 0.0
  %685 = vmatpush2.msra.mxu0 0.0
  %686 = vmatprep.subr.mxu0 0.0
  %687 = vmatpush2.msra.mxu0 0.0
  %688 = vmatprep.subr.mxu0 0.0
  %689 = vmatpush2.msra.mxu0 0.0
  %690 = vmatprep.subr.mxu0 0.0
  %691 = vmatpush2.msra.mxu0 0.0
  %692 = vmatprep.subr.mxu0 0.0
  %693 = vmatpush2.msra.mxu0 0.0
  %694 = vmatprep.subr.mxu0 0.0
  %695 = vmatpush2.msra.mxu0 0.0
  %696 = vmatprep.subr.mxu0 0.0
  %697 = vmatpush2.msra.mxu0 0.0
  %698 = vmatprep.mubr.f32.mxu0 0.0
  %699 = vmatmul.mubr.f32.gmra.mxu0 %v629
  %v700 = vpop.f32.mrf.mxu0
  %v701 = vadd.f32 0.0, %v700
  %v702 = vpop.f32.mrf.mxu0
  %703 = vmatprep.mubr.f32.mxu0 0.0
  %704 = vmatmul.mubr.f32.gmra.mxu0 %v632
  %v705 = vpop.f32.mrf.mxu0
  %v706 = vadd.f32 0.0, %v705
  %v707 = vpop.f32.mrf.mxu0
  %708 = vdwg.mxu0
  %v709 = vadd.f32 %v614, %v701
  %v710 = vadd.f32 %v619, %v706
  %711 = vrot.lane.b32.xlu0 %v444, 80
  %v712 = vpop.permute.xlu0 %711
  %713 = vrot.lane.b32.xlu0 %v449, 80
  %v714 = vpop.permute.xlu0 %713
  %v718 = vsel %vm29, %v374, 0
  %v721 = vsel %vm29, %v376, 0
  %723 = vmatprep.subr.mxu0 0.0
  %724 = vmatpush1.msra.mxu0 0.0
  %725 = vmatprep.subr.mxu0 0.0
  %726 = vmatpush1.msra.mxu0 0.0
  %727 = vmatprep.subr.mxu0 0.0
  %728 = vmatpush1.msra.mxu0 0.0
  %729 = vmatprep.subr.mxu0 0.0
  %730 = vmatpush1.msra.mxu0 0.0
  %731 = vmatprep.subr.mxu0 0.0
  %732 = vmatpush1.msra.mxu0 0.0
  %733 = vmatprep.subr.mxu0 0.0
  %734 = vmatpush1.msra.mxu0 0.0
  %735 = vmatprep.subr.mxu0 0.0
  %736 = vmatpush1.msra.mxu0 0.0
  %737 = vmatprep.subr.mxu0 0.0
  %738 = vmatpush1.msra.mxu0 0.0
  %739 = vmatprep.subr.mxu0 0.0
  %740 = vmatpush1.msra.mxu0 0.0
  %741 = vmatprep.subr.mxu0 0.0
  %742 = vmatpush1.msra.mxu0 0.0
  %743 = vmatprep.subr.mxu0 0.0
  %744 = vmatpush1.msra.mxu0 0.0
  %745 = vmatprep.subr.mxu0 0.0
  %746 = vmatpush1.msra.mxu0 0.0
  %747 = vmatprep.subr.mxu0 0.0
  %748 = vmatpush1.msra.mxu0 0.0
  %749 = vmatprep.subr.mxu0 0.0
  %750 = vmatpush1.msra.mxu0 0.0
  %751 = vmatprep.subr.mxu0 0.0
  %752 = vmatpush1.msra.mxu0 %v714
  %753 = vmatprep.subr.mxu0 0.0
  %754 = vmatpush1.msra.mxu0 %v712
  %755 = vmatprep.subr.mxu0 0.0
  %756 = vmatpush2.msra.mxu0 0.0
  %757 = vmatprep.subr.mxu0 0.0
  %758 = vmatpush2.msra.mxu0 0.0
  %759 = vmatprep.subr.mxu0 0.0
  %760 = vmatpush2.msra.mxu0 0.0
  %761 = vmatprep.subr.mxu0 0.0
  %762 = vmatpush2.msra.mxu0 0.0
  %763 = vmatprep.subr.mxu0 0.0
  %764 = vmatpush2.msra.mxu0 0.0
  %765 = vmatprep.subr.mxu0 0.0
  %766 = vmatpush2.msra.mxu0 0.0
  %767 = vmatprep.subr.mxu0 0.0
  %768 = vmatpush2.msra.mxu0 0.0
  %769 = vmatprep.subr.mxu0 0.0
  %770 = vmatpush2.msra.mxu0 0.0
  %771 = vmatprep.subr.mxu0 0.0
  %772 = vmatpush2.msra.mxu0 0.0
  %773 = vmatprep.subr.mxu0 0.0
  %774 = vmatpush2.msra.mxu0 0.0
  %775 = vmatprep.subr.mxu0 0.0
  %776 = vmatpush2.msra.mxu0 0.0
  %777 = vmatprep.subr.mxu0 0.0
  %778 = vmatpush2.msra.mxu0 0.0
  %779 = vmatprep.subr.mxu0 0.0
  %780 = vmatpush2.msra.mxu0 0.0
  %781 = vmatprep.subr.mxu0 0.0
  %782 = vmatpush2.msra.mxu0 0.0
  %783 = vmatprep.subr.mxu0 0.0
  %784 = vmatpush2.msra.mxu0 0.0
  %785 = vmatprep.subr.mxu0 0.0
  %786 = vmatpush2.msra.mxu0 0.0
  %787 = vmatprep.mubr.f32.mxu0 0.0
  %788 = vmatmul.mubr.f32.gmra.mxu0 %v718
  %v789 = vpop.f32.mrf.mxu0
  %v790 = vadd.f32 0.0, %v789
  %v791 = vpop.f32.mrf.mxu0
  %792 = vmatprep.mubr.f32.mxu0 0.0
  %793 = vmatmul.mubr.f32.gmra.mxu0 %v721
  %v794 = vpop.f32.mrf.mxu0
  %v795 = vadd.f32 0.0, %v794
  %v796 = vpop.f32.mrf.mxu0
  %797 = vdwg.mxu0
  %v798 = vadd.f32 %v709, %v790
  %v799 = vadd.f32 %v710, %v795
  %v800 = vadd.f32 %v14, %v798
  %v801 = vadd.f32 %v15, %v799
  %v802 = vlaneseq
  %v803 = vshrl.u32 %v802, 7
  %v804 = vsub.s32 0, %v803
  %v805 = vrot.slane %v20, %v804
  %v806 = vadd.f32 %v800, %v805
  %v807 = vadd.f32 %v801, %v805
  %v808 = vsel %vm29, %v806, 0.0
  %809 = vadd.xlane.f32.xlu0 %v808
  %v810 = vpop.xlane.xlu0 %809
  %v811 = vsel %vm29, %v807, 0.0
  %812 = vadd.xlane.f32.xlu0 %v811
  %v813 = vpop.xlane.xlu0 %812
  %v814 = vmul.f32 %v810, %v36
  %v815 = vmul.f32 %v813, %v36
  %v816 = vsub.f32 %v806, %v814
  %v817 = vsub.f32 %v807, %v815
  %v818 = vmul.f32 %v816, %v816
  %v819 = vmul.f32 %v817, %v817
  %v820 = vsel %vm29, %v818, 0.0
  %821 = vadd.xlane.f32.xlu0 %v820
  %v822 = vpop.xlane.xlu0 %821
  %v823 = vsel %vm29, %v819, 0.0
  %824 = vadd.xlane.f32.xlu0 %v823
  %v825 = vpop.xlane.xlu0 %824
  %v826 = vmul.f32 %v822, %v36
  %v827 = vmul.f32 %v825, %v36
  %v828 = vadd.f32 %v826, 1e-05
  %v829 = vadd.f32 %v827, 1e-05
  %v830 = vrsqrt.pop %v828
  %v831 = vrsqrt.pop %v829
  %v832 = vmul.f32 %v816, %v830
  %v833 = vmul.f32 %v817, %v831
  %v834 = vlaneseq
  %v835 = vshrl.u32 %v834, 7
  %v836 = vsub.s32 0, %v835
  %v837 = vrot.slane %v18, %v836
  %v838 = vmul.f32 %v832, %v837
  %v839 = vmul.f32 %v833, %v837
  %v840 = vlaneseq
  %v841 = vshrl.u32 %v840, 7
  %v842 = vsub.s32 0, %v841
  %v843 = vrot.slane %v19, %v842
  %v844 = vadd.f32 %v838, %v843
  %v845 = vadd.f32 %v839, %v843
  %v846 = vld [vmem:[%s2] sm:$0xff]
  %v847 = vld [vmem:[%s2 + $0x8] sm:$0xff]
  %v848 = vld [vmem:[%s2 + $0x10] sm:$0x1]
  %v849 = vlaneseq
  %v850 = vshrl.u32 %v849, 7
  %v851 = vsub.s32 0, %v850
  %v852 = vrot.slane %v848, %v851
  %v854 = vsel %vm29, %v844, 0
  %v857 = vsel %vm29, %v845, 0
  %859 = vmatprep.subr.mxu0 0.0
  %860 = vmatpush1.msra.mxu0 0.0
  %861 = vmatprep.subr.mxu0 0.0
  %862 = vmatpush1.msra.mxu0 0.0
  %863 = vmatprep.subr.mxu0 0.0
  %864 = vmatpush1.msra.mxu0 0.0
  %865 = vmatprep.subr.mxu0 0.0
  %866 = vmatpush1.msra.mxu0 0.0
  %867 = vmatprep.subr.mxu0 0.0
  %868 = vmatpush1.msra.mxu0 0.0
  %869 = vmatprep.subr.mxu0 0.0
  %870 = vmatpush1.msra.mxu0 0.0
  %871 = vmatprep.subr.mxu0 0.0
  %872 = vmatpush1.msra.mxu0 0.0
  %873 = vmatprep.subr.mxu0 0.0
  %874 = vmatpush1.msra.mxu0 0.0
  %875 = vmatprep.subr.mxu0 0.0
  %876 = vmatpush1.msra.mxu0 0.0
  %877 = vmatprep.subr.mxu0 0.0
  %878 = vmatpush1.msra.mxu0 0.0
  %879 = vmatprep.subr.mxu0 0.0
  %880 = vmatpush1.msra.mxu0 0.0
  %881 = vmatprep.subr.mxu0 0.0
  %882 = vmatpush1.msra.mxu0 0.0
  %883 = vmatprep.subr.mxu0 0.0
  %884 = vmatpush1.msra.mxu0 0.0
  %885 = vmatprep.subr.mxu0 0.0
  %886 = vmatpush1.msra.mxu0 0.0
  %887 = vmatprep.subr.mxu0 0.0
  %888 = vmatpush1.msra.mxu0 %v847
  %889 = vmatprep.subr.mxu0 0.0
  %890 = vmatpush1.msra.mxu0 %v846
  %891 = vmatprep.subr.mxu0 0.0
  %892 = vmatpush2.msra.mxu0 0.0
  %893 = vmatprep.subr.mxu0 0.0
  %894 = vmatpush2.msra.mxu0 0.0
  %895 = vmatprep.subr.mxu0 0.0
  %896 = vmatpush2.msra.mxu0 0.0
  %897 = vmatprep.subr.mxu0 0.0
  %898 = vmatpush2.msra.mxu0 0.0
  %899 = vmatprep.subr.mxu0 0.0
  %900 = vmatpush2.msra.mxu0 0.0
  %901 = vmatprep.subr.mxu0 0.0
  %902 = vmatpush2.msra.mxu0 0.0
  %903 = vmatprep.subr.mxu0 0.0
  %904 = vmatpush2.msra.mxu0 0.0
  %905 = vmatprep.subr.mxu0 0.0
  %906 = vmatpush2.msra.mxu0 0.0
  %907 = vmatprep.subr.mxu0 0.0
  %908 = vmatpush2.msra.mxu0 0.0
  %909 = vmatprep.subr.mxu0 0.0
  %910 = vmatpush2.msra.mxu0 0.0
  %911 = vmatprep.subr.mxu0 0.0
  %912 = vmatpush2.msra.mxu0 0.0
  %913 = vmatprep.subr.mxu0 0.0
  %914 = vmatpush2.msra.mxu0 0.0
  %915 = vmatprep.subr.mxu0 0.0
  %916 = vmatpush2.msra.mxu0 0.0
  %917 = vmatprep.subr.mxu0 0.0
  %918 = vmatpush2.msra.mxu0 0.0
  %919 = vmatprep.subr.mxu0 0.0
  %920 = vmatpush2.msra.mxu0 0.0
  %921 = vmatprep.subr.mxu0 0.0
  %922 = vmatpush2.msra.mxu0 0.0
  %923 = vmatprep.mubr.f32.mxu0 0.0
  %924 = vmatmul.mubr.f32.gmra.mxu0 %v854
  %v925 = vpop.f32.mrf.mxu0
  %v926 = vadd.f32 %v852, %v925
  %v927 = vpop.f32.mrf.mxu0
  %928 = vmatprep.mubr.f32.mxu0 0.0
  %929 = vmatmul.mubr.f32.gmra.mxu0 %v857
  %v930 = vpop.f32.mrf.mxu0
  %v931 = vadd.f32 %v852, %v930
  %v932 = vpop.f32.mrf.mxu0
  %933 = vdwg.mxu0
  %v934 = vmax.f32 %v926, 0.0
  %v935 = vmax.f32 %v931, 0.0
  %v936 = vld [vmem:[%s2 + $0x18] sm:$0xff]
  %v937 = vld [vmem:[%s2 + $0x20] sm:$0xff]
  %v938 = vld [vmem:[%s2 + $0x28] sm:$0xff]
  %v939 = vld [vmem:[%s2 + $0x30] sm:$0xff]
  %v940 = vld [vmem:[%s2 + $0x38] sm:$0xff]
  %v941 = vld [vmem:[%s2 + $0x40] sm:$0xff]
  %v942 = vld [vmem:[%s2 + $0x48] sm:$0xff]
  %v943 = vld [vmem:[%s2 + $0x50] sm:$0xff]
  %v944 = vld [vmem:[%s2 + $0x58] sm:$0x1]
  %v945 = vlaneseq
  %v946 = vshrl.u32 %v945, 7
  %v947 = vsub.s32 0, %v946
  %v948 = vrot.slane %v944, %v947
  %vm949 = vcmask 523264
  %v951 = vsel %vm949, %v934, 0
  %v954 = vsel %vm949, %v935, 0
  %956 = vmatprep.subr.mxu0 0.0
  %957 = vmatpush1.msra.mxu0 0.0
  %958 = vmatprep.subr.mxu0 0.0
  %959 = vmatpush1.msra.mxu0 0.0
  %960 = vmatprep.subr.mxu0 0.0
  %961 = vmatpush1.msra.mxu0 0.0
  %962 = vmatprep.subr.mxu0 0.0
  %963 = vmatpush1.msra.mxu0 0.0
  %964 = vmatprep.subr.mxu0 0.0
  %965 = vmatpush1.msra.mxu0 0.0
  %966 = vmatprep.subr.mxu0 0.0
  %967 = vmatpush1.msra.mxu0 0.0
  %968 = vmatprep.subr.mxu0 0.0
  %969 = vmatpush1.msra.mxu0 0.0
  %970 = vmatprep.subr.mxu0 0.0
  %971 = vmatpush1.msra.mxu0 0.0
  %972 = vmatprep.subr.mxu0 0.0
  %973 = vmatpush1.msra.mxu0 %v943
  %974 = vmatprep.subr.mxu0 0.0
  %975 = vmatpush1.msra.mxu0 %v942
  %976 = vmatprep.subr.mxu0 0.0
  %977 = vmatpush1.msra.mxu0 %v941
  %978 = vmatprep.subr.mxu0 0.0
  %979 = vmatpush1.msra.mxu0 %v940
  %980 = vmatprep.subr.mxu0 0.0
  %981 = vmatpush1.msra.mxu0 %v939
  %982 = vmatprep.subr.mxu0 0.0
  %983 = vmatpush1.msra.mxu0 %v938
  %984 = vmatprep.subr.mxu0 0.0
  %985 = vmatpush1.msra.mxu0 %v937
  %986 = vmatprep.subr.mxu0 0.0
  %987 = vmatpush1.msra.mxu0 %v936
  %988 = vmatprep.subr.mxu0 0.0
  %989 = vmatpush2.msra.mxu0 0.0
  %990 = vmatprep.subr.mxu0 0.0
  %991 = vmatpush2.msra.mxu0 0.0
  %992 = vmatprep.subr.mxu0 0.0
  %993 = vmatpush2.msra.mxu0 0.0
  %994 = vmatprep.subr.mxu0 0.0
  %995 = vmatpush2.msra.mxu0 0.0
  %996 = vmatprep.subr.mxu0 0.0
  %997 = vmatpush2.msra.mxu0 0.0
  %998 = vmatprep.subr.mxu0 0.0
  %999 = vmatpush2.msra.mxu0 0.0
  %1000 = vmatprep.subr.mxu0 0.0
  %1001 = vmatpush2.msra.mxu0 0.0
  %1002 = vmatprep.subr.mxu0 0.0
  %1003 = vmatpush2.msra.mxu0 0.0
  %1004 = vmatprep.subr.mxu0 0.0
  %1005 = vmatpush2.msra.mxu0 0.0
  %1006 = vmatprep.subr.mxu0 0.0
  %1007 = vmatpush2.msra.mxu0 0.0
  %1008 = vmatprep.subr.mxu0 0.0
  %1009 = vmatpush2.msra.mxu0 0.0
  %1010 = vmatprep.subr.mxu0 0.0
  %1011 = vmatpush2.msra.mxu0 0.0
  %1012 = vmatprep.subr.mxu0 0.0
  %1013 = vmatpush2.msra.mxu0 0.0
  %1014 = vmatprep.subr.mxu0 0.0
  %1015 = vmatpush2.msra.mxu0 0.0
  %1016 = vmatprep.subr.mxu0 0.0
  %1017 = vmatpush2.msra.mxu0 0.0
  %1018 = vmatprep.subr.mxu0 0.0
  %1019 = vmatpush2.msra.mxu0 0.0
  %1020 = vmatprep.mubr.f32.mxu0 0.0
  %1021 = vmatmul.mubr.f32.gmra.mxu0 %v951
  %v1022 = vpop.f32.mrf.mxu0
  %v1023 = vadd.f32 %v948, %v1022
  %v1024 = vpop.f32.mrf.mxu0
  %1025 = vmatprep.mubr.f32.mxu0 0.0
  %1026 = vmatmul.mubr.f32.gmra.mxu0 %v954
  %v1027 = vpop.f32.mrf.mxu0
  %v1028 = vadd.f32 %v948, %v1027
  %v1029 = vpop.f32.mrf.mxu0
  %1030 = vdwg.mxu0
  %v1031 = vadd.f32 %v806, %v1023
  %v1032 = vadd.f32 %v807, %v1028
  %1033 = vst.msk [vmem:[%s3] sm:$0xff] %vm29, %v1031
  %1034 = vst.msk [vmem:[%s3 + $0x8] sm:$0xff] %vm29, %v1032
  %1035 = vst.msk [vmem:[%s3 + $0x10] sm:$0xff] %vm29, %v362
  %1036 = vst.msk [vmem:[%s3 + $0x18] sm:$0xff] %vm29, %v364
  %1037 = vst.msk [vmem:[%s3 + $0x20] sm:$0xff] %vm29, %v366
  %1038 = vst.msk [vmem:[%s3 + $0x28] sm:$0xff] %vm29, %v368
  %1039 = vst.msk [vmem:[%s3 + $0x30] sm:$0xff] %vm29, %v370
  %1040 = vst.msk [vmem:[%s3 + $0x38] sm:$0xff] %vm29, %v372
  %1041 = vst.msk [vmem:[%s3 + $0x40] sm:$0xff] %vm29, %v374
  %1042 = vst.msk [vmem:[%s3 + $0x48] sm:$0xff] %vm29, %v376
  // Predicated region
  $region14: #{_block_forward_impl.1} parent=0 // pred_check
    _
  $region15: #{_block_forward_impl.1} parent=0 // pred_check_branch
    %1044 = sbr.rel (0) target = $region17
  $region16: #{_block_forward_impl.1} parent=0 // pred_region
    _
  $region17: #{_block_forward_impl.1} parent=0 // pred_fallthru
    _
  // Predicated region
  $region18: #{_block_forward_impl.1} parent=0 // pred_check
    _
  $region19: #{_block_forward_impl.1} parent=0 // pred_check_branch
    %1046 = sbr.rel (0) target = $region21
  $region20: #{_block_forward_impl.1} parent=0 // pred_region
    _
  $region21: #{_block_forward_impl.1} parent=0 // pred_fallthru
    _

</llo_original>
